<compile_context>
chip_gen: v5e
topology: v5e:2x2
jax: 0.10.0
libtpu: 0.0.40
codegen_flags: <defaults>
</compile_context>

<pallas_src>
import jax
import jax.numpy as jnp
from jax.experimental import pallas as pl
from jax.experimental.pallas import tpu as pltpu


def calc_tensor(num_modes: int) -> jnp.ndarray:
    """JAX port of the PyTorch calc_tensor(); returns float32 (M, M, M, M)."""
    v = jnp.arange(1, num_modes + 1, dtype=jnp.int32)
    m, i, j, k = jnp.meshgrid(v, v, v, v, indexing="ij")
    delta = lambda a, b: (a == b).astype(jnp.int32)
    B = i * j * k**2 * (
        delta(k + i, m + j) - delta(k + i, -(m + j))
        + delta(k + i, m - j) - delta(k + i, -(m - j))
        + delta(k - i, m + j) - delta(k - i, -(m + j))
        + delta(k - i, m - j) - delta(k - i, -(m - j))
    )
    A = 0.5 * jnp.pi**4 * (
        B + jnp.transpose(B, (0, 3, 1, 2)) + jnp.transpose(B, (0, 2, 3, 1))
    )
    return A.astype(jnp.float32)


def prepack_force_tensor(num_modes: int, dtype=jnp.float32) -> jnp.ndarray:
    """One-time setup (hoisted out of the per-call path).

    Returns A3 of shape (M^2, M^2) with A3[n*M + k, m*M + i] = -A[i, m, n, k].
    The minus sign of the forward pass is folded into this constant.
    On v6e/v7x, dtype=jnp.bfloat16 halves DMA bytes and uses the fast MXU path.
    """
    M = num_modes
    A = calc_tensor(M)
    a3 = -jnp.transpose(A, (2, 3, 1, 0)).reshape(M * M, M * M)
    return a3.astype(dtype)


def _force_kernel(q_ref, a3_ref, o_ref):
    M = q_ref.shape[1]
    qb = q_ref[...]                                              # (Bt, M) f32

    # P[b, n*M + k] = q[b, n] * q[b, k]   -- built in VMEM (VPU), no HBM slabs.
    P = jnp.concatenate([qb[:, n:n + 1] * qb for n in range(M)], axis=1)  # (Bt, M^2)

    # D[b, m*M + i] = sum_{nk} P[b, nk] * A3[nk, m*M + i]       (MXU, f32 acc)
    D = jnp.dot(P.astype(a3_ref.dtype), a3_ref[...],
                preferred_element_type=jnp.float32)              # (Bt, M^2)

    # out[b, i] = sum_m q[b, m] * D[b, m*M + i]   (M static lane slices, VPU fma)
    acc = qb[:, 0:1] * D[:, 0:M]
    for mm in range(1, M):
        acc = acc + qb[:, mm:mm + 1] * D[:, mm * M:(mm + 1) * M]

    o_ref[...] = acc.astype(o_ref.dtype)


def _round_up(x: int, m: int) -> int:
    return ((x + m - 1) // m) * m


def nonlinear_string_force(q: jnp.ndarray, a3: jnp.ndarray) -> jnp.ndarray:
    """q: (B, M) float32, a3: prepacked (M^2, M^2) constant  ->  (B, M) float32."""
    Bsz, M = q.shape
    assert a3.shape == (M * M, M * M), a3.shape

    # Pad batch to a multiple of 8 sublanes (f32 min tile); padded rows are zero
    # and are sliced off below.
    Bt = min(_round_up(Bsz, 8), 256)          # batch tile (sublane-aligned)
    Bpad = _round_up(Bsz, Bt)
    qp = q if Bpad == Bsz else jnp.pad(q, ((0, Bpad - Bsz), (0, 0)))

    out = pl.pallas_call(
        _force_kernel,
        out_shape=jax.ShapeDtypeStruct((Bpad, M), jnp.float32),
        grid=(Bpad // Bt,),
        in_specs=[
            pl.BlockSpec((Bt, M), lambda b: (b, 0)),             # q batch tile
            pl.BlockSpec((M * M, M * M), lambda b: (0, 0)),      # A3, VMEM-resident
        ],
        out_specs=pl.BlockSpec((Bt, M), lambda b: (b, 0)),
        compiler_params=pltpu.CompilerParams(
            dimension_semantics=("parallel",),
        ),
    )(qp, a3)

    return out[:Bsz]


def _reference(q: jnp.ndarray, A: jnp.ndarray) -> jnp.ndarray:
    """Plain-JAX replica of the PyTorch forward for validation."""
    M = q.shape[1]
    q_vec = jnp.einsum("bm,bn,bk->mnkb", q, q, q).reshape(M**3, -1)
    return -(A.reshape(M, M**3) @ q_vec).T


if __name__ == "__main__":
    num_modes = 8   # M  -> contraction axis M^2 = 64 lanes, output M^2 lanes
    batch = 4

    key = jax.random.PRNGKey(0)
    q = jax.random.normal(key, (batch, num_modes), dtype=jnp.float32)

    a3 = prepack_force_tensor(num_modes)        # one-time prepack (negation folded)

    out = nonlinear_string_force(q, a3)
    out = jax.block_until_ready(out)

    ref = _reference(q, calc_tensor(num_modes))
    rel_err = float(jnp.max(jnp.abs(out - ref)) / (jnp.max(jnp.abs(ref)) + 1e-6))
    assert out.shape == (batch, num_modes), out.shape
    assert rel_err < 1e-2, f"mismatch: rel_err={rel_err}"

    print("KERNEL_OK")
</pallas_src>

<mosaic_0001>
module attributes {stable_mosaic.version = 11 : i64} {
  func.func @_force_kernel(%arg0: i32, %arg1: memref<8x8xf32, #tpu.memory_space<vmem>>, %arg2: memref<64x64xf32, #tpu.memory_space<vmem>>, %arg3: memref<8x8xf32, #tpu.memory_space<vmem>>) attributes {dimension_semantics = [#tpu.dimension_semantics<parallel>], iteration_bounds = array<i64: 1>, scalar_prefetch = 0 : i64, scratch_operands = 0 : i64, tpu.core_type = #tpu.core_type<tc>, window_params = [{transform_indices = @transform_0, window_bounds = array<i64: 8, 8>}, {pipeline_mode = #tpu.pipeline_mode<synchronous>, transform_indices = @transform_1, window_bounds = array<i64: 64, 64>}, {transform_indices = @transform_2, window_bounds = array<i64: 8, 8>}]} {
    %c0 = arith.constant 0 : index
    %c0_0 = arith.constant 0 : index
    %0 = vector.load %arg1[%c0, %c0_0] : memref<8x8xf32, #tpu.memory_space<vmem>>, vector<8x8xf32>
    %1 = vector.extract_strided_slice %0 {offsets = [0, 0], sizes = [8, 1], strides = [1, 1]} : vector<8x8xf32> to vector<8x1xf32>
    %2 = vector.broadcast %1 : vector<8x1xf32> to vector<8x8xf32>
    %3 = arith.mulf %2, %0 : vector<8x8xf32>
    %4 = vector.extract_strided_slice %0 {offsets = [0, 1], sizes = [8, 1], strides = [1, 1]} : vector<8x8xf32> to vector<8x1xf32>
    %5 = vector.broadcast %4 : vector<8x1xf32> to vector<8x8xf32>
    %6 = arith.mulf %5, %0 : vector<8x8xf32>
    %7 = vector.extract_strided_slice %0 {offsets = [0, 2], sizes = [8, 1], strides = [1, 1]} : vector<8x8xf32> to vector<8x1xf32>
    %8 = vector.broadcast %7 : vector<8x1xf32> to vector<8x8xf32>
    %9 = arith.mulf %8, %0 : vector<8x8xf32>
    %10 = vector.extract_strided_slice %0 {offsets = [0, 3], sizes = [8, 1], strides = [1, 1]} : vector<8x8xf32> to vector<8x1xf32>
    %11 = vector.broadcast %10 : vector<8x1xf32> to vector<8x8xf32>
    %12 = arith.mulf %11, %0 : vector<8x8xf32>
    %13 = vector.extract_strided_slice %0 {offsets = [0, 4], sizes = [8, 1], strides = [1, 1]} : vector<8x8xf32> to vector<8x1xf32>
    %14 = vector.broadcast %13 : vector<8x1xf32> to vector<8x8xf32>
    %15 = arith.mulf %14, %0 : vector<8x8xf32>
    %16 = vector.extract_strided_slice %0 {offsets = [0, 5], sizes = [8, 1], strides = [1, 1]} : vector<8x8xf32> to vector<8x1xf32>
    %17 = vector.broadcast %16 : vector<8x1xf32> to vector<8x8xf32>
    %18 = arith.mulf %17, %0 : vector<8x8xf32>
    %19 = vector.extract_strided_slice %0 {offsets = [0, 6], sizes = [8, 1], strides = [1, 1]} : vector<8x8xf32> to vector<8x1xf32>
    %20 = vector.broadcast %19 : vector<8x1xf32> to vector<8x8xf32>
    %21 = arith.mulf %20, %0 : vector<8x8xf32>
    %22 = vector.extract_strided_slice %0 {offsets = [0, 7], sizes = [8, 1], strides = [1, 1]} : vector<8x8xf32> to vector<8x1xf32>
    %23 = vector.broadcast %22 : vector<8x1xf32> to vector<8x8xf32>
    %24 = arith.mulf %23, %0 : vector<8x8xf32>
    %25 = tpu.concatenate %3, %6, %9, %12, %15, %18, %21, %24 in 1 : vector<8x8xf32>, vector<8x8xf32>, vector<8x8xf32>, vector<8x8xf32>, vector<8x8xf32>, vector<8x8xf32>, vector<8x8xf32>, vector<8x8xf32> -> vector<8x64xf32>
    %c0_1 = arith.constant 0 : index
    %c0_2 = arith.constant 0 : index
    %26 = vector.load %arg2[%c0_1, %c0_2] : memref<64x64xf32, #tpu.memory_space<vmem>>, vector<64x64xf32>
    %cst = arith.constant dense<0.000000e+00> : vector<8x64xf32>
    %27 = tpu.matmul %25, %26, %cst {dimension_numbers = #tpu.dot_dimension_numbers<[1], [0], [0], [1], [0, 0, 1, 1], [], []>} : vector<8x64xf32>, vector<64x64xf32>, vector<8x64xf32> -> vector<8x64xf32>
    %28 = vector.extract_strided_slice %0 {offsets = [0, 0], sizes = [8, 1], strides = [1, 1]} : vector<8x8xf32> to vector<8x1xf32>
    %29 = vector.extract_strided_slice %27 {offsets = [0, 0], sizes = [8, 8], strides = [1, 1]} : vector<8x64xf32> to vector<8x8xf32>
    %30 = vector.broadcast %28 : vector<8x1xf32> to vector<8x8xf32>
    %31 = arith.mulf %30, %29 : vector<8x8xf32>
    %32 = vector.extract_strided_slice %0 {offsets = [0, 1], sizes = [8, 1], strides = [1, 1]} : vector<8x8xf32> to vector<8x1xf32>
    %33 = vector.extract_strided_slice %27 {offsets = [0, 8], sizes = [8, 8], strides = [1, 1]} : vector<8x64xf32> to vector<8x8xf32>
    %34 = vector.broadcast %32 : vector<8x1xf32> to vector<8x8xf32>
    %35 = arith.mulf %34, %33 : vector<8x8xf32>
    %36 = arith.addf %31, %35 : vector<8x8xf32>
    %37 = vector.extract_strided_slice %0 {offsets = [0, 2], sizes = [8, 1], strides = [1, 1]} : vector<8x8xf32> to vector<8x1xf32>
    %38 = vector.extract_strided_slice %27 {offsets = [0, 16], sizes = [8, 8], strides = [1, 1]} : vector<8x64xf32> to vector<8x8xf32>
    %39 = vector.broadcast %37 : vector<8x1xf32> to vector<8x8xf32>
    %40 = arith.mulf %39, %38 : vector<8x8xf32>
    %41 = arith.addf %36, %40 : vector<8x8xf32>
    %42 = vector.extract_strided_slice %0 {offsets = [0, 3], sizes = [8, 1], strides = [1, 1]} : vector<8x8xf32> to vector<8x1xf32>
    %43 = vector.extract_strided_slice %27 {offsets = [0, 24], sizes = [8, 8], strides = [1, 1]} : vector<8x64xf32> to vector<8x8xf32>
    %44 = vector.broadcast %42 : vector<8x1xf32> to vector<8x8xf32>
    %45 = arith.mulf %44, %43 : vector<8x8xf32>
    %46 = arith.addf %41, %45 : vector<8x8xf32>
    %47 = vector.extract_strided_slice %0 {offsets = [0, 4], sizes = [8, 1], strides = [1, 1]} : vector<8x8xf32> to vector<8x1xf32>
    %48 = vector.extract_strided_slice %27 {offsets = [0, 32], sizes = [8, 8], strides = [1, 1]} : vector<8x64xf32> to vector<8x8xf32>
    %49 = vector.broadcast %47 : vector<8x1xf32> to vector<8x8xf32>
    %50 = arith.mulf %49, %48 : vector<8x8xf32>
    %51 = arith.addf %46, %50 : vector<8x8xf32>
    %52 = vector.extract_strided_slice %0 {offsets = [0, 5], sizes = [8, 1], strides = [1, 1]} : vector<8x8xf32> to vector<8x1xf32>
    %53 = vector.extract_strided_slice %27 {offsets = [0, 40], sizes = [8, 8], strides = [1, 1]} : vector<8x64xf32> to vector<8x8xf32>
    %54 = vector.broadcast %52 : vector<8x1xf32> to vector<8x8xf32>
    %55 = arith.mulf %54, %53 : vector<8x8xf32>
    %56 = arith.addf %51, %55 : vector<8x8xf32>
    %57 = vector.extract_strided_slice %0 {offsets = [0, 6], sizes = [8, 1], strides = [1, 1]} : vector<8x8xf32> to vector<8x1xf32>
    %58 = vector.extract_strided_slice %27 {offsets = [0, 48], sizes = [8, 8], strides = [1, 1]} : vector<8x64xf32> to vector<8x8xf32>
    %59 = vector.broadcast %57 : vector<8x1xf32> to vector<8x8xf32>
    %60 = arith.mulf %59, %58 : vector<8x8xf32>
    %61 = arith.addf %56, %60 : vector<8x8xf32>
    %62 = vector.extract_strided_slice %0 {offsets = [0, 7], sizes = [8, 1], strides = [1, 1]} : vector<8x8xf32> to vector<8x1xf32>
    %63 = vector.extract_strided_slice %27 {offsets = [0, 56], sizes = [8, 8], strides = [1, 1]} : vector<8x64xf32> to vector<8x8xf32>
    %64 = vector.broadcast %62 : vector<8x1xf32> to vector<8x8xf32>
    %65 = arith.mulf %64, %63 : vector<8x8xf32>
    %66 = arith.addf %61, %65 : vector<8x8xf32>
    %c0_3 = arith.constant 0 : index
    %c0_4 = arith.constant 0 : index
    %67 = vector.load %arg3[%c0_3, %c0_4] : memref<8x8xf32, #tpu.memory_space<vmem>>, vector<8x8xf32>
    tpu.vector_store %arg3[%c0_3, %c0_4], %66 {strides = array<i32>} : memref<8x8xf32, #tpu.memory_space<vmem>>, vector<8x8xf32>,
    return
  }
  func.func @transform_0(%arg0: i32) -> (i32, i32) {
    %c0_i32 = arith.constant 0 : i32
    %c0_i32_0 = arith.constant 0 : i32
    return %arg0, %c0_i32 : i32, i32
  }
  func.func @transform_1(%arg0: i32) -> (i32, i32) {
    %c0_i32 = arith.constant 0 : i32
    %c0_i32_0 = arith.constant 0 : i32
    %c0_i32_1 = arith.constant 0 : i32
    return %c0_i32, %c0_i32_0 : i32, i32
  }
  func.func @transform_2(%arg0: i32) -> (i32, i32) {
    %c0_i32 = arith.constant 0 : i32
    %c0_i32_0 = arith.constant 0 : i32
    return %arg0, %c0_i32 : i32, i32
  }
}

</mosaic_0001>

<llo_original>
// kernel: tpu_custom_call.1
$region0: #{tpu_custom_call.1}
  #allocation0 [shape = 'u32[]', space=smem, size = 0x4, offset = 0x4, fixed_abs, tag = 'smem constant byte address 0x4 - core index']
  #allocation1 [shape = 'u32[72,128]{1,0:T(1,128)}', space=vmem, size = 0x9000, scoped, tag = 'internal scratch']
  %s0 = inlined_call_operand.hbm [shape: f32[8,8], index: 0, kind: input, shape index: {}]
  %s1 = inlined_call_operand.hbm [shape: f32[64,64], index: 1, kind: input, shape index: {}]
  %s2 = inlined_call_operand.hbm [shape: f32[8,8], index: 2, kind: output, shape index: {}]
  %s3 = sld [smem:[#allocation0]]
  $region26: #{tpu_custom_call.1} parent=0
    _
  %s5 = ssub.s32 1, %s3
  %s6 = scalar_select 0, %s5, %s3
  $region1: #{tpu_custom_call.1} parent=0
    #allocation2 [shape = 'u8[4096]{0}', space=vmem, size = 0x1000, scoped, tag = 'input window, operand 0, single buffered']
    #allocation3 [shape = 's32[1]{0}', space=sflag, size = 0x4, scoped, tag = 'scoped memory for tpu_custom_call.1']
    #allocation4 [shape = 's32[1]{0}', space=sflag, size = 0x4, scoped, tag = 'scoped memory for tpu_custom_call.1']
    #allocation5 [shape = 'u8[32768]{0}', space=vmem, size = 0x8000, scoped, tag = 'input window, operand 1, single buffered']
    #allocation6 [shape = 's32[1]{0}', space=sflag, size = 0x4, scoped, tag = 'scoped memory for tpu_custom_call.1']
    #allocation7 [shape = 'u8[4096]{0}', space=vmem, size = 0x1000, scoped, tag = 'output window, operand 0, single buffered']
    %7 = vsyncpa [#allocation3], 0
    %8 = vsyncpa [#allocation6], 0
    %9 = vsyncpa [#allocation4], 0
    // Predicated region
    $region2: #{tpu_custom_call.1} parent=1 // pred_check
      _
    $region3: #{tpu_custom_call.1} parent=1 // pred_check_branch
      %11 = sbr.rel (0) target = $region5
    $region4: #{tpu_custom_call.1} parent=1 // pred_region
      %13 = vsyncadd [#allocation3], 0
      %s15 = sshll.u32 %s0, 4
      %s16 = int_to_ptr.hbm [resolvable:$true] %s15
      %s17 = sshll.u32 [#allocation2], 4
      %s18 = int_to_ptr.vmem [resolvable:$true] %s17
      %20 = dma.hbm_to_vmem [thread:$0]  %s16, 128, %s18, [#allocation3]
    $region5: #{tpu_custom_call.1} parent=1 // pred_fallthru
      _
    // Predicated region
    $region6: #{tpu_custom_call.1} parent=1 // pred_check
      _
    $region7: #{tpu_custom_call.1} parent=1 // pred_check_branch
      %22 = sbr.rel (0) target = $region9
    $region8: #{tpu_custom_call.1} parent=1 // pred_region
      %24 = vsyncadd [#allocation6], 0
      %s25 = sshll.u32 %s1, 4
      %s26 = int_to_ptr.hbm [resolvable:$true] %s25
      %s27 = sshll.u32 [#allocation5], 4
      %s28 = int_to_ptr.vmem [resolvable:$true] %s27
      %33 = dma.hbm_to_vmem [thread:$0]  %s26, 1024, %s28, [#allocation6], 128, 128, 8
    $region9: #{tpu_custom_call.1} parent=1 // pred_fallthru
      _
    // Predicated region
    $region10: #{tpu_custom_call.1} parent=1 // pred_check
      _
    $region11: #{tpu_custom_call.1} parent=1 // pred_check_branch
      %35 = sbr.rel (0) target = $region13
    $region12: #{tpu_custom_call.1} parent=1 // pred_region
      %37 = dma.done [#allocation3], 128
    $region13: #{tpu_custom_call.1} parent=1 // pred_fallthru
      _
    // Predicated region
    $region14: #{tpu_custom_call.1} parent=1 // pred_check
      _
    $region15: #{tpu_custom_call.1} parent=1 // pred_check_branch
      %39 = sbr.rel (0) target = $region17
    $region16: #{tpu_custom_call.1} parent=1 // pred_region
      %41 = dma.done [#allocation6], 1024
    $region17: #{tpu_custom_call.1} parent=1 // pred_fallthru
      _
    %v42 = vld [vmem:[#allocation2] sm:$0xff]
    %44 = vset.pattern.permute.xlu0 0
    %45 = vperm.xlu0 %44, %v42
    %v46 = vpop.permute.xlu0 %45
    %v48 = vmul.f32 %v46, %v42
    %49 = vset.pattern.permute.xlu0 1
    %50 = vperm.xlu0 %49, %v42
    %v51 = vpop.permute.xlu0 %50
    %v53 = vmul.f32 %v51, %v42
    %54 = vset.pattern.permute.xlu0 2
    %55 = vperm.xlu0 %54, %v42
    %v56 = vpop.permute.xlu0 %55
    %v58 = vmul.f32 %v56, %v42
    %59 = vset.pattern.permute.xlu0 3
    %60 = vperm.xlu0 %59, %v42
    %v61 = vpop.permute.xlu0 %60
    %v63 = vmul.f32 %v61, %v42
    %64 = vset.pattern.permute.xlu0 4
    %65 = vperm.xlu0 %64, %v42
    %v66 = vpop.permute.xlu0 %65
    %v68 = vmul.f32 %v66, %v42
    %69 = vset.pattern.permute.xlu0 5
    %70 = vperm.xlu0 %69, %v42
    %v71 = vpop.permute.xlu0 %70
    %v73 = vmul.f32 %v71, %v42
    %74 = vset.pattern.permute.xlu0 6
    %75 = vperm.xlu0 %74, %v42
    %v76 = vpop.permute.xlu0 %75
    %v78 = vmul.f32 %v76, %v42
    %79 = vset.pattern.permute.xlu0 7
    %80 = vperm.xlu0 %79, %v42
    %v81 = vpop.permute.xlu0 %80
    %v83 = vmul.f32 %v81, %v42
    %85 = vrot.lane.b32.xlu0 %v53, 8
    %v86 = vpop.permute.xlu0 %85
    %89 = vrot.lane.b32.xlu0 %v58, 16
    %v90 = vpop.permute.xlu0 %89
    %93 = vrot.lane.b32.xlu0 %v63, 24
    %v94 = vpop.permute.xlu0 %93
    %97 = vrot.lane.b32.xlu0 %v68, 32
    %v98 = vpop.permute.xlu0 %97
    %101 = vrot.lane.b32.xlu0 %v73, 40
    %v102 = vpop.permute.xlu0 %101
    %105 = vrot.lane.b32.xlu0 %v78, 48
    %v106 = vpop.permute.xlu0 %105
    %109 = vrot.lane.b32.xlu0 %v83, 56
    %v110 = vpop.permute.xlu0 %109
    %vm112 = vcmask 64512
    %v113 = vsel %vm112, %v48, %v86
    %vm114 = vcmask 130048
    %v115 = vsel %vm114, %v113, %v90
    %vm116 = vcmask 195584
    %v117 = vsel %vm116, %v115, %v94
    %vm118 = vcmask 261120
    %v119 = vsel %vm118, %v117, %v98
    %vm120 = vcmask 326656
    %v121 = vsel %vm120, %v119, %v102
    %vm122 = vcmask 392192
    %v123 = vsel %vm122, %v121, %v106
    %vm124 = vcmask 457728
    %v125 = vsel %vm124, %v123, %v110
    %v126 = vld [vmem:[#allocation5] sm:$0xff]
    %v127 = vld [vmem:[#allocation5 + $0x8] sm:$0xff]
    %v128 = vld [vmem:[#allocation5 + $0x10] sm:$0xff]
    %v129 = vld [vmem:[#allocation5 + $0x18] sm:$0xff]
    %v130 = vld [vmem:[#allocation5 + $0x20] sm:$0xff]
    %v131 = vld [vmem:[#allocation5 + $0x28] sm:$0xff]
    %v132 = vld [vmem:[#allocation5 + $0x30] sm:$0xff]
    %v133 = vld [vmem:[#allocation5 + $0x38] sm:$0xff]
    %vm134 = vcmask 523264
    %v136 = vsel %vm134, %v125, 0
    %138 = vmatpush.msra.mxu0 0.0
    %139 = vmatpush.msra.mxu0 0.0
    %140 = vmatpush.msra.mxu0 0.0
    %141 = vmatpush.msra.mxu0 0.0
    %142 = vmatpush.msra.mxu0 0.0
    %143 = vmatpush.msra.mxu0 0.0
    %144 = vmatpush.msra.mxu0 0.0
    %145 = vmatpush.msra.mxu0 0.0
    %146 = vmatpush.msra.mxu0 %v133
    %147 = vmatpush.msra.mxu0 %v132
    %148 = vmatpush.msra.mxu0 %v131
    %149 = vmatpush.msra.mxu0 %v130
    %150 = vmatpush.msra.mxu0 %v129
    %151 = vmatpush.msra.mxu0 %v128
    %152 = vmatpush.msra.mxu0 %v127
    %153 = vmatpush.msra.mxu0 %v126
    %154 = vmatmul.f32.gmra.mxu0 %v136
    %v155 = vpop.f32.mrf.mxu0
    %v156 = vadd.f32 0.0, %v155
    %157 = vdwg.mxu0
    %v158 = vmul.f32 %v46, %v156
    %v159 = vmul.f32 %v51, %v156
    %161 = vrot.lane.b32.xlu0 %v159, 120
    %v162 = vpop.permute.xlu0 %161
    %v164 = vadd.f32 %v158, %v162
    %v165 = vmul.f32 %v56, %v156
    %167 = vrot.lane.b32.xlu0 %v165, 112
    %v168 = vpop.permute.xlu0 %167
    %v170 = vadd.f32 %v164, %v168
    %v171 = vmul.f32 %v61, %v156
    %173 = vrot.lane.b32.xlu0 %v171, 104
    %v174 = vpop.permute.xlu0 %173
    %v176 = vadd.f32 %v170, %v174
    %v177 = vmul.f32 %v66, %v156
    %179 = vrot.lane.b32.xlu0 %v177, 96
    %v180 = vpop.permute.xlu0 %179
    %v182 = vadd.f32 %v176, %v180
    %v183 = vmul.f32 %v71, %v156
    %185 = vrot.lane.b32.xlu0 %v183, 88
    %v186 = vpop.permute.xlu0 %185
    %v188 = vadd.f32 %v182, %v186
    %v189 = vmul.f32 %v76, %v156
    %191 = vrot.lane.b32.xlu0 %v189, 80
    %v192 = vpop.permute.xlu0 %191
    %v194 = vadd.f32 %v188, %v192
    %v195 = vmul.f32 %v81, %v156
    %197 = vrot.lane.b32.xlu0 %v195, 72
    %v198 = vpop.permute.xlu0 %197
    %v200 = vadd.f32 %v194, %v198
    %201 = vst.msk [vmem:[#allocation7] sm:$0xff] %vm112, %v200
    // Predicated region
    $region18: #{tpu_custom_call.1} parent=1 // pred_check
      _
    $region19: #{tpu_custom_call.1} parent=1 // pred_check_branch
      %203 = sbr.rel (0) target = $region21
    $region20: #{tpu_custom_call.1} parent=1 // pred_region
      %205 = vsyncadd [#allocation4], 0
      %s207 = sshll.u32 [#allocation7], 4
      %s208 = int_to_ptr.vmem [resolvable:$true] %s207
      %s209 = sshll.u32 %s2, 4
      %s210 = int_to_ptr.hbm [resolvable:$true] %s209
      %212 = dma.vmem_to_hbm [thread:$0]  %s208, 128, %s210, [#allocation4]
    $region21: #{tpu_custom_call.1} parent=1 // pred_fallthru
      _
    // Predicated region
    $region22: #{tpu_custom_call.1} parent=1 // pred_check
      _
    $region23: #{tpu_custom_call.1} parent=1 // pred_check_branch
      %214 = sbr.rel (0) target = $region25
    $region24: #{tpu_custom_call.1} parent=1 // pred_region
      %216 = dma.done [#allocation4], 128
    $region25: #{tpu_custom_call.1} parent=1 // pred_fallthru
      _
    %217 = vsyncpa [#allocation3], 1
    %218 = vsyncpa [#allocation6], 1
    %219 = vsyncpa [#allocation4], 1

</llo_original>
